<compile_context>
chip_gen: v7x
topology: tpu7x:2x2x1
jax: 0.10.0
libtpu: 0.0.40
codegen_flags: <defaults>
</compile_context>

<pallas_src>
import jax
import jax.numpy as jnp
from jax.experimental import pallas as pl
from jax.experimental.pallas import tpu as pltpu


# ----------------------------------------------------------------------------
# Kernel
# ----------------------------------------------------------------------------
def critic_kernel(obs_ref, act_ref, wto_ref, wta_ref, wh_ref, w2_ref, vec_ref,
                  out_ref):
    """One batch tile of the full Critic forward.

    obs_ref : [tb, obs_dim]  f32   observations
    act_ref : [tb, act_dim]  f32   actions
    wto_ref : [obs_dim, H]   bf16  trunk weight rows for obs
    wta_ref : [act_dim, H]   bf16  trunk weight rows for action
    wh_ref  : [H, 2H]        bf16  fused Q-head first-layer weight [q1_w1|q2_w1]
    w2_ref  : [2H, 128]      bf16  packed final weights (q1_w2->col 0, q2_w2->col 1)
    vec_ref : [8, W]         f32   packed bias / LayerNorm rows (W = max(2H, 128))
    out_ref : [tb, 128]      f32   lane-dense output; q1 = lane 0, q2 = lane 1
    """
    H = wto_ref.shape[1]
    mx = wh_ref.dtype                     # MXU operand dtype (bf16 by default)

    # Packed small vectors: static ref slices (views -> only the needed rows load).
    bt = vec_ref[0:1, :H]                 # trunk bias
    ln_g = vec_ref[1:2, :H]               # LayerNorm gamma
    ln_b = vec_ref[2:3, :H]               # LayerNorm beta
    b1 = vec_ref[3:4, :2 * H]             # [1, 2H] = [q1_b1 | q2_b1]
    b2 = vec_ref[4:5, :128]               # [1, 128] = [q1_b2, q2_b2, 0, ...]

    # ---- trunk: Linear over [obs | act] without materializing the concat ----
    h = (jnp.dot(obs_ref[...].astype(mx), wto_ref[...],
                 preferred_element_type=jnp.float32)
         + jnp.dot(act_ref[...].astype(mx), wta_ref[...],
                   preferred_element_type=jnp.float32)
         + bt)                            # [tb, H] f32

    # ---- LayerNorm(eps=1e-5), two-pass variance (stable), then Tanh (f32) ----
    mu = jnp.mean(h, axis=-1, keepdims=True)
    d = h - mu
    var = jnp.mean(d * d, axis=-1, keepdims=True)
    h = jnp.tanh(d * jax.lax.rsqrt(var + 1e-5) * ln_g + ln_b)   # [tb, H]

    # ---- both Q heads fused: one [H, 2H] matmul, one ReLU pass ----
    z = jnp.dot(h.astype(mx), wh_ref[...],
                preferred_element_type=jnp.float32) + b1        # [tb, 2H]
    z = jnp.maximum(z, 0.0)

    # ---- final Linear(H, 1) per head as ONE MXU matmul against packed W2 ----
    q = jnp.dot(z.astype(mx), w2_ref[...],
                preferred_element_type=jnp.float32) + b2        # [tb, 128]
    out_ref[...] = q


# ----------------------------------------------------------------------------
# Parameter packing (done once per parameter set, plain JAX)
# ----------------------------------------------------------------------------
def pack_params(p, obs_dim, matmul_dtype=jnp.bfloat16):
    """Pack the 12 small parameter tensors into 5 kernel buffers."""
    H = p["wt"].shape[1]
    W = max(2 * H, 128)

    wt_obs = p["wt"][:obs_dim].astype(matmul_dtype)             # [obs_dim, H]
    wt_act = p["wt"][obs_dim:].astype(matmul_dtype)             # [act_dim, H]
    wh = jnp.concatenate([p["q1_w1"], p["q2_w1"]],
                         axis=1).astype(matmul_dtype)           # [H, 2H]

    # Final-layer weights as a [2H, 128] matrix so z @ w2p puts q1 in lane 0
    # (rows :H hit column 0) and q2 in lane 1 (rows H: hit column 1).
    w2p = jnp.zeros((2 * H, 128), jnp.float32)
    w2p = w2p.at[:H, 0].set(p["q1_w2"][0])
    w2p = w2p.at[H:, 1].set(p["q2_w2"][0])
    w2p = w2p.astype(matmul_dtype)

    def row(x):
        x = x.astype(jnp.float32)
        return jnp.pad(x, ((0, 0), (0, W - x.shape[1])))

    b2_row = jnp.zeros((1, 128), jnp.float32)
    b2_row = b2_row.at[0, 0].set(p["q1_b2"][0, 0])
    b2_row = b2_row.at[0, 1].set(p["q2_b2"][0, 0])

    vec = jnp.concatenate([
        row(p["bt"]),                                            # row 0
        row(p["ln_g"]),                                          # row 1
        row(p["ln_b"]),                                          # row 2
        row(jnp.concatenate([p["q1_b1"], p["q2_b1"]], axis=1)),  # row 3
        row(b2_row),                                             # row 4
        jnp.zeros((3, W), jnp.float32),                          # rows 5-7 pad
    ], axis=0)                                                   # [8, W]

    return wt_obs, wt_act, wh, w2p, vec


# ----------------------------------------------------------------------------
# Batch tiling: rows multiple of 8, tb <= 256, nb >= 2 whenever possible so the
# parallel grid axis shards across TensorCores (v7x megacore).
# ----------------------------------------------------------------------------
def _batch_tiling(B, tb_cap=256):
    b8 = max(8, -(-B // 8) * 8)            # pad to sublane multiple
    if b8 <= 16:
        return b8, b8, 1                   # tiny eval batch: single block
    if b8 <= tb_cap:
        tb = -(-b8 // 16) * 8              # ~half the batch, rounded up to 8
        return 2 * tb, tb, 2
    Bp = -(-b8 // tb_cap) * tb_cap
    return Bp, tb_cap, Bp // tb_cap


# ----------------------------------------------------------------------------
# Wrapper
# ----------------------------------------------------------------------------
def critic_forward(obs, action, params, matmul_dtype=jnp.bfloat16):
    """obs: [B, obs_dim], action: [B, act_dim] -> (q1 [B,1], q2 [B,1])."""
    B, obs_dim = obs.shape
    act_dim = action.shape[1]
    H = params["wt"].shape[1]
    in_dim = obs_dim + act_dim
    W = max(2 * H, 128)

    wt_obs, wt_act, wh, w2p, vec = pack_params(params, obs_dim, matmul_dtype)

    Bp, tb, nb = _batch_tiling(B)
    if Bp != B:
        pad = ((0, Bp - B), (0, 0))
        obs = jnp.pad(obs, pad)
        action = jnp.pad(action, pad)

    # VMEM budget estimate (double-buffered inputs/weights + f32 intermediates).
    bpe = jnp.dtype(matmul_dtype).itemsize
    resident_bytes = (in_dim * H + H * 2 * H + 2 * H * 128) * bpe + 8 * W * 4
    tile_bytes = tb * (obs_dim + act_dim + 128) * 4
    interm_bytes = tb * (3 * H + 4 * H) * 4
    est_vmem = 2 * (resident_bytes + tile_bytes) + interm_bytes
    vmem_limit = int(min(64 << 20, max(16 << 20, 2 * est_vmem)))

    cost = pl.CostEstimate(
        flops=2 * Bp * (in_dim * H + H * 2 * H + 2 * H * 128) + 12 * Bp * H,
        transcendentals=Bp * (H + 1),                       # tanh + rsqrt
        bytes_accessed=(Bp * (obs_dim + act_dim) * 4 + resident_bytes
                        + Bp * 128 * 4),
    )

    grid_spec = pltpu.PrefetchScalarGridSpec(
        num_scalar_prefetch=0,
        grid=(nb,),
        in_specs=[
            pl.BlockSpec((tb, obs_dim), lambda i: (i, 0)),
            pl.BlockSpec((tb, act_dim), lambda i: (i, 0)),
            pl.BlockSpec((obs_dim, H), lambda i: (0, 0)),    # resident weights
            pl.BlockSpec((act_dim, H), lambda i: (0, 0)),
            pl.BlockSpec((H, 2 * H), lambda i: (0, 0)),
            pl.BlockSpec((2 * H, 128), lambda i: (0, 0)),
            pl.BlockSpec((8, W), lambda i: (0, 0)),
        ],
        out_specs=pl.BlockSpec((tb, 128), lambda i: (i, 0)),  # lane-dense out
    )

    out = pl.pallas_call(
        critic_kernel,
        out_shape=jax.ShapeDtypeStruct((Bp, 128), jnp.float32),
        grid_spec=grid_spec,
        compiler_params=pltpu.CompilerParams(
            dimension_semantics=("parallel",),
            vmem_limit_bytes=vmem_limit),
        cost_estimate=cost,
    )(obs, action, wt_obs, wt_act, wh, w2p, vec)

    return out[:B, 0:1], out[:B, 1:2]


# ----------------------------------------------------------------------------
# Init + pure-JAX reference
# ----------------------------------------------------------------------------
def init_params(key, obs_dim, action_dim, hidden_dim):
    """Deterministic synthetic init (weights stored transposed as [in, out])."""
    in_dim = obs_dim + action_dim
    ks = jax.random.split(key, 8)
    s = 0.1
    return {
        "wt":    s * jax.random.normal(ks[0], (in_dim, hidden_dim), jnp.float32),
        "bt":    s * jax.random.normal(ks[1], (1, hidden_dim), jnp.float32),
        "ln_g":  jnp.ones((1, hidden_dim), jnp.float32),
        "ln_b":  jnp.zeros((1, hidden_dim), jnp.float32),
        "q1_w1": s * jax.random.normal(ks[2], (hidden_dim, hidden_dim), jnp.float32),
        "q1_b1": s * jax.random.normal(ks[3], (1, hidden_dim), jnp.float32),
        "q1_w2": s * jax.random.normal(ks[4], (1, hidden_dim), jnp.float32),
        "q1_b2": jnp.zeros((1, 1), jnp.float32),
        "q2_w1": s * jax.random.normal(ks[5], (hidden_dim, hidden_dim), jnp.float32),
        "q2_b1": s * jax.random.normal(ks[6], (1, hidden_dim), jnp.float32),
        "q2_w2": s * jax.random.normal(ks[7], (1, hidden_dim), jnp.float32),
        "q2_b2": jnp.zeros((1, 1), jnp.float32),
    }


def critic_ref(obs, action, p):
    """Pure-JAX f32 reference (mirrors the PyTorch module)."""
    x = jnp.concatenate([obs, action], axis=-1)
    h = x @ p["wt"] + p["bt"]
    mu = jnp.mean(h, -1, keepdims=True)
    var = jnp.mean((h - mu) ** 2, -1, keepdims=True)
    h = jnp.tanh((h - mu) / jnp.sqrt(var + 1e-5) * p["ln_g"] + p["ln_b"])

    def q(w1, b1, w2, b2):
        z = jnp.maximum(h @ w1 + b1, 0.0)
        return jnp.sum(z * w2, -1, keepdims=True) + b2

    return (q(p["q1_w1"], p["q1_b1"], p["q1_w2"], p["q1_b2"]),
            q(p["q2_w1"], p["q2_b1"], p["q2_w2"], p["q2_b2"]))


if __name__ == "__main__":
    B, OBS_DIM, ACT_DIM, HIDDEN = 8, 24, 8, 32

    key = jax.random.PRNGKey(0)
    k_obs, k_act, k_par = jax.random.split(key, 3)
    obs = jax.random.normal(k_obs, (B, OBS_DIM), jnp.float32)
    action = jax.random.normal(k_act, (B, ACT_DIM), jnp.float32)
    params = init_params(k_par, OBS_DIM, ACT_DIM, HIDDEN)

    r1, r2 = critic_ref(obs, action, params)

    # f32 MXU-operand path: tight tolerance against the f32 reference.
    q1f, q2f = critic_forward(obs, action, params, matmul_dtype=jnp.float32)
    jax.block_until_ready((q1f, q2f))
    assert q1f.shape == (B, 1) and q2f.shape == (B, 1)
    assert jnp.allclose(q1f, r1, atol=2e-5), "Q1 mismatch (f32 path)"
    assert jnp.allclose(q2f, r2, atol=2e-5), "Q2 mismatch (f32 path)"

    # Default bf16 MXU-operand path (f32 accumulation): relaxed tolerance.
    q1, q2 = critic_forward(obs, action, params)
    jax.block_until_ready((q1, q2))
    assert q1.shape == (B, 1) and q2.shape == (B, 1)
    assert jnp.allclose(q1, r1, atol=5e-2, rtol=5e-2), "Q1 mismatch (bf16 path)"
    assert jnp.allclose(q2, r2, atol=5e-2, rtol=5e-2), "Q2 mismatch (bf16 path)"

    print("KERNEL_OK")
</pallas_src>

<mosaic_0001>
module attributes {stable_mosaic.version = 11 : i64} {
  func.func @critic_kernel(%arg0: i32, %arg1: memref<8x24xf32, #tpu.memory_space<vmem>>, %arg2: memref<8x8xf32, #tpu.memory_space<vmem>>, %arg3: memref<24x32xf32, #tpu.memory_space<vmem>>, %arg4: memref<8x32xf32, #tpu.memory_space<vmem>>, %arg5: memref<32x64xf32, #tpu.memory_space<vmem>>, %arg6: memref<64x128xf32, #tpu.memory_space<vmem>>, %arg7: memref<8x128xf32, #tpu.memory_space<vmem>>, %arg8: memref<8x128xf32, #tpu.memory_space<vmem>>) attributes {dimension_semantics = [#tpu.dimension_semantics<parallel>], iteration_bounds = array<i64: 1>, scalar_prefetch = 0 : i64, scratch_operands = 0 : i64, tpu.core_type = #tpu.core_type<tc>, window_params = [{transform_indices = @transform_0, window_bounds = array<i64: 8, 24>}, {transform_indices = @transform_1, window_bounds = array<i64: 8, 8>}, {pipeline_mode = #tpu.pipeline_mode<synchronous>, transform_indices = @transform_2, window_bounds = array<i64: 24, 32>}, {pipeline_mode = #tpu.pipeline_mode<synchronous>, transform_indices = @transform_3, window_bounds = array<i64: 8, 32>}, {pipeline_mode = #tpu.pipeline_mode<synchronous>, transform_indices = @transform_4, window_bounds = array<i64: 32, 64>}, {pipeline_mode = #tpu.pipeline_mode<synchronous>, transform_indices = @transform_5, window_bounds = array<i64: 64, 128>}, {pipeline_mode = #tpu.pipeline_mode<synchronous>, transform_indices = @transform_6, window_bounds = array<i64: 8, 128>}, {transform_indices = @transform_7, window_bounds = array<i64: 8, 128>}]} {
    %c0 = arith.constant 0 : index
    %c0_0 = arith.constant 0 : index
    %0 = vector.load %arg7[%c0, %c0_0] : memref<8x128xf32, #tpu.memory_space<vmem>>, vector<1x32xf32>
    %c1 = arith.constant 1 : index
    %c0_1 = arith.constant 0 : index
    %1 = vector.load %arg7[%c1, %c0_1] : memref<8x128xf32, #tpu.memory_space<vmem>>, vector<1x32xf32>
    %c2 = arith.constant 2 : index
    %c0_2 = arith.constant 0 : index
    %2 = vector.load %arg7[%c2, %c0_2] : memref<8x128xf32, #tpu.memory_space<vmem>>, vector<1x32xf32>
    %c3 = arith.constant 3 : index
    %c0_3 = arith.constant 0 : index
    %3 = vector.load %arg7[%c3, %c0_3] : memref<8x128xf32, #tpu.memory_space<vmem>>, vector<1x64xf32>
    %c4 = arith.constant 4 : index
    %c0_4 = arith.constant 0 : index
    %4 = vector.load %arg7[%c4, %c0_4] : memref<8x128xf32, #tpu.memory_space<vmem>>, vector<1x128xf32>
    %c0_5 = arith.constant 0 : index
    %c0_6 = arith.constant 0 : index
    %5 = vector.load %arg1[%c0_5, %c0_6] : memref<8x24xf32, #tpu.memory_space<vmem>>, vector<8x24xf32>
    %c0_7 = arith.constant 0 : index
    %c0_8 = arith.constant 0 : index
    %6 = vector.load %arg3[%c0_7, %c0_8] : memref<24x32xf32, #tpu.memory_space<vmem>>, vector<24x32xf32>
    %cst = arith.constant dense<0.000000e+00> : vector<8x32xf32>
    %7 = tpu.matmul %5, %6, %cst {dimension_numbers = #tpu.dot_dimension_numbers<[1], [0], [0], [1], [0, 0, 1, 1], [], []>} : vector<8x24xf32>, vector<24x32xf32>, vector<8x32xf32> -> vector<8x32xf32>
    %c0_9 = arith.constant 0 : index
    %c0_10 = arith.constant 0 : index
    %8 = vector.load %arg2[%c0_9, %c0_10] : memref<8x8xf32, #tpu.memory_space<vmem>>, vector<8x8xf32>
    %c0_11 = arith.constant 0 : index
    %c0_12 = arith.constant 0 : index
    %9 = vector.load %arg4[%c0_11, %c0_12] : memref<8x32xf32, #tpu.memory_space<vmem>>, vector<8x32xf32>
    %cst_13 = arith.constant dense<0.000000e+00> : vector<8x32xf32>
    %10 = tpu.matmul %8, %9, %cst_13 {dimension_numbers = #tpu.dot_dimension_numbers<[1], [0], [0], [1], [0, 0, 1, 1], [], []>} : vector<8x8xf32>, vector<8x32xf32>, vector<8x32xf32> -> vector<8x32xf32>
    %11 = arith.addf %7, %10 : vector<8x32xf32>
    %12 = vector.broadcast %0 : vector<1x32xf32> to vector<8x32xf32>
    %13 = arith.addf %11, %12 : vector<8x32xf32>
    %cst_14 = arith.constant dense<0.000000e+00> : vector<8xf32>
    %14 = vector.multi_reduction <add>, %13, %cst_14 [1] : vector<8x32xf32> to vector<8xf32>
    %15 = vector.shape_cast %14 : vector<8xf32> to vector<8x1xf32>
    %cst_15 = arith.constant 3.200000e+01 : f32
    %16 = vector.broadcast %cst_15 : f32 to vector<8x1xf32>
    %17 = arith.divf %15, %16 : vector<8x1xf32>
    %18 = vector.broadcast %17 : vector<8x1xf32> to vector<8x32xf32>
    %19 = arith.subf %13, %18 : vector<8x32xf32>
    %20 = arith.mulf %19, %19 : vector<8x32xf32>
    %cst_16 = arith.constant dense<0.000000e+00> : vector<8xf32>
    %21 = vector.multi_reduction <add>, %20, %cst_16 [1] : vector<8x32xf32> to vector<8xf32>
    %22 = vector.shape_cast %21 : vector<8xf32> to vector<8x1xf32>
    %cst_17 = arith.constant 3.200000e+01 : f32
    %23 = vector.broadcast %cst_17 : f32 to vector<8x1xf32>
    %24 = arith.divf %22, %23 : vector<8x1xf32>
    %cst_18 = arith.constant 9.99999974E-6 : f32
    %25 = vector.broadcast %cst_18 : f32 to vector<8x1xf32>
    %26 = arith.addf %24, %25 : vector<8x1xf32>
    %27 = math.rsqrt %26 : vector<8x1xf32>
    %28 = vector.broadcast %27 : vector<8x1xf32> to vector<8x32xf32>
    %29 = arith.mulf %19, %28 : vector<8x32xf32>
    %30 = vector.broadcast %1 : vector<1x32xf32> to vector<8x32xf32>
    %31 = arith.mulf %29, %30 : vector<8x32xf32>
    %32 = vector.broadcast %2 : vector<1x32xf32> to vector<8x32xf32>
    %33 = arith.addf %31, %32 : vector<8x32xf32>
    %34 = math.tanh %33 : vector<8x32xf32>
    %c0_19 = arith.constant 0 : index
    %c0_20 = arith.constant 0 : index
    %35 = vector.load %arg5[%c0_19, %c0_20] : memref<32x64xf32, #tpu.memory_space<vmem>>, vector<32x64xf32>
    %cst_21 = arith.constant dense<0.000000e+00> : vector<8x64xf32>
    %36 = tpu.matmul %34, %35, %cst_21 {dimension_numbers = #tpu.dot_dimension_numbers<[1], [0], [0], [1], [0, 0, 1, 1], [], []>} : vector<8x32xf32>, vector<32x64xf32>, vector<8x64xf32> -> vector<8x64xf32>
    %37 = vector.broadcast %3 : vector<1x64xf32> to vector<8x64xf32>
    %38 = arith.addf %36, %37 : vector<8x64xf32>
    %cst_22 = arith.constant 0.000000e+00 : f32
    %39 = vector.broadcast %cst_22 : f32 to vector<8x64xf32>
    %40 = arith.maximumf %38, %39 : vector<8x64xf32>
    %c0_23 = arith.constant 0 : index
    %c0_24 = arith.constant 0 : index
    %41 = vector.load %arg6[%c0_23, %c0_24] : memref<64x128xf32, #tpu.memory_space<vmem>>, vector<64x128xf32>
    %cst_25 = arith.constant dense<0.000000e+00> : vector<8x128xf32>
    %42 = tpu.matmul %40, %41, %cst_25 {dimension_numbers = #tpu.dot_dimension_numbers<[1], [0], [0], [1], [0, 0, 1, 1], [], []>} : vector<8x64xf32>, vector<64x128xf32>, vector<8x128xf32> -> vector<8x128xf32>
    %43 = vector.broadcast %4 : vector<1x128xf32> to vector<8x128xf32>
    %44 = arith.addf %42, %43 : vector<8x128xf32>
    %c0_26 = arith.constant 0 : index
    %c0_27 = arith.constant 0 : index
    %45 = vector.load %arg8[%c0_26, %c0_27] : memref<8x128xf32, #tpu.memory_space<vmem>>, vector<8x128xf32>
    tpu.vector_store %arg8[%c0_26, %c0_27], %44 {strides = array<i32>} : memref<8x128xf32, #tpu.memory_space<vmem>>, vector<8x128xf32>,
    return
  }
  func.func @transform_0(%arg0: i32) -> (i32, i32) {
    %c0_i32 = arith.constant 0 : i32
    %c0_i32_0 = arith.constant 0 : i32
    return %arg0, %c0_i32 : i32, i32
  }
  func.func @transform_1(%arg0: i32) -> (i32, i32) {
    %c0_i32 = arith.constant 0 : i32
    %c0_i32_0 = arith.constant 0 : i32
    return %arg0, %c0_i32 : i32, i32
  }
  func.func @transform_2(%arg0: i32) -> (i32, i32) {
    %c0_i32 = arith.constant 0 : i32
    %c0_i32_0 = arith.constant 0 : i32
    %c0_i32_1 = arith.constant 0 : i32
    return %c0_i32, %c0_i32_0 : i32, i32
  }
  func.func @transform_3(%arg0: i32) -> (i32, i32) {
    %c0_i32 = arith.constant 0 : i32
    %c0_i32_0 = arith.constant 0 : i32
    %c0_i32_1 = arith.constant 0 : i32
    return %c0_i32, %c0_i32_0 : i32, i32
  }
  func.func @transform_4(%arg0: i32) -> (i32, i32) {
    %c0_i32 = arith.constant 0 : i32
    %c0_i32_0 = arith.constant 0 : i32
    %c0_i32_1 = arith.constant 0 : i32
    return %c0_i32, %c0_i32_0 : i32, i32
  }
  func.func @transform_5(%arg0: i32) -> (i32, i32) {
    %c0_i32 = arith.constant 0 : i32
    %c0_i32_0 = arith.constant 0 : i32
    %c0_i32_1 = arith.constant 0 : i32
    return %c0_i32, %c0_i32_0 : i32, i32
  }
  func.func @transform_6(%arg0: i32) -> (i32, i32) {
    %c0_i32 = arith.constant 0 : i32
    %c0_i32_0 = arith.constant 0 : i32
    %c0_i32_1 = arith.constant 0 : i32
    return %c0_i32, %c0_i32_0 : i32, i32
  }
  func.func @transform_7(%arg0: i32) -> (i32, i32) {
    %c0_i32 = arith.constant 0 : i32
    %c0_i32_0 = arith.constant 0 : i32
    return %arg0, %c0_i32 : i32, i32
  }
}

</mosaic_0001>

<llo_original>
// kernel: tpu_custom_call.1
$region0: #{tpu_custom_call.1}
  #allocation0 [shape = 'u32[]', space=smem, size = 0x4, offset = 0x4, fixed_abs, tag = 'smem constant byte address 0x4 - core index']
  #allocation1 [shape = 'u32[144,128]{1,0:T(1,128)}', space=vmem, size = 0x12000, scoped, tag = 'internal scratch']
  %s0 = inlined_call_operand.hbm [shape: f32[8,24], index: 0, kind: input, shape index: {}]
  %s1 = inlined_call_operand.hbm [shape: f32[8,8], index: 1, kind: input, shape index: {}]
  %s2 = inlined_call_operand.hbm [shape: f32[24,32], index: 2, kind: input, shape index: {}]
  %s3 = inlined_call_operand.vmem [shape: f32[8,32], index: 3, kind: input, shape index: {}]
  %s4 = inlined_call_operand.hbm [shape: f32[32,64], index: 4, kind: input, shape index: {}]
  %s5 = inlined_call_operand.hbm [shape: f32[64,128], index: 5, kind: input, shape index: {}]
  %s6 = inlined_call_operand.vmem [shape: f32[8,128], index: 6, kind: input, shape index: {}]
  %s7 = inlined_call_operand.hbm [shape: f32[8,128], index: 7, kind: output, shape index: {}]
  %s8 = sld [smem:[#allocation0]]
  $region58: #{tpu_custom_call.1} parent=0
    _
  %s10 = ssub.s32 1, %s8
  %s11 = scalar_select 0, %s10, %s8
  $region1: #{tpu_custom_call.1} parent=0
    #allocation2 [shape = 'u8[4096]{0}', space=vmem, size = 0x1000, scoped, tag = 'input window, operand 0, single buffered']
    #allocation3 [shape = 's32[1]{0}', space=sflag, size = 0x4, scoped, tag = 'scoped memory for tpu_custom_call.1']
    #allocation4 [shape = 's32[1]{0}', space=sflag, size = 0x4, scoped, tag = 'scoped memory for tpu_custom_call.1']
    #allocation5 [shape = 'u8[4096]{0}', space=vmem, size = 0x1000, scoped, tag = 'input window, operand 1, single buffered']
    #allocation6 [shape = 's32[1]{0}', space=sflag, size = 0x4, scoped, tag = 'scoped memory for tpu_custom_call.1']
    #allocation7 [shape = 'u8[12288]{0}', space=vmem, size = 0x3000, scoped, tag = 'input window, operand 2, single buffered']
    #allocation8 [shape = 'u8[16384]{0}', space=vmem, size = 0x4000, scoped, tag = 'input window, operand 4, single buffered']
    #allocation9 [shape = 's32[1]{0}', space=sflag, size = 0x4, scoped, tag = 'scoped memory for tpu_custom_call.1']
    #allocation10 [shape = 'u8[32768]{0}', space=vmem, size = 0x8000, scoped, tag = 'input window, operand 5, single buffered']
    #allocation11 [shape = 'u8[4096]{0}', space=vmem, size = 0x1000, scoped, tag = 'output window, operand 0, single buffered']
    %12 = vsyncpa [#allocation3], 0
    %13 = vsyncpa [#allocation6], 0
    %14 = vsyncpa [#allocation9], 0
    %15 = vsyncpa [#allocation4], 0
    // Predicated region
    $region2: #{tpu_custom_call.1} parent=1 // pred_check
      _
    $region3: #{tpu_custom_call.1} parent=1 // pred_check_branch
      %17 = sbr.rel (0) target = $region5
    $region4: #{tpu_custom_call.1} parent=1 // pred_region
      %s19 = ssub.s32 128, 128
      %20 = vsyncadd [#allocation3], %s19
      %s22 = sshll.u32 [#allocation2], 4
      %s23 = int_to_ptr.vmem [resolvable:$true] %s22
      %25 = dma.hbm_to_vmem [thread:$0]  %s0, 128, %s23, [#allocation3]
    $region5: #{tpu_custom_call.1} parent=1 // pred_fallthru
      _
    // Predicated region
    $region6: #{tpu_custom_call.1} parent=1 // pred_check
      _
    $region7: #{tpu_custom_call.1} parent=1 // pred_check_branch
      %27 = sbr.rel (0) target = $region9
    $region8: #{tpu_custom_call.1} parent=1 // pred_region
      %s29 = ssub.s32 128, 128
      %30 = vsyncadd [#allocation6], %s29
      %s32 = sshll.u32 [#allocation5], 4
      %s33 = int_to_ptr.vmem [resolvable:$true] %s32
      %35 = dma.hbm_to_vmem [thread:$0]  %s1, 128, %s33, [#allocation6]
    $region9: #{tpu_custom_call.1} parent=1 // pred_fallthru
      _
    // Predicated region
    $region10: #{tpu_custom_call.1} parent=1 // pred_check
      _
    $region11: #{tpu_custom_call.1} parent=1 // pred_check_branch
      %37 = sbr.rel (0) target = $region13
    $region12: #{tpu_custom_call.1} parent=1 // pred_region
      %s39 = ssub.s32 384, 384
      %40 = vsyncadd [#allocation6], %s39
      %s41 = sshll.u32 [#allocation7], 4
      %s42 = int_to_ptr.vmem [resolvable:$true] %s41
      %47 = dma.hbm_to_vmem [thread:$0]  %s2, 384, %s42, [#allocation6], 128, 128, 8
    $region13: #{tpu_custom_call.1} parent=1 // pred_fallthru
      _
    // Predicated region
    $region14: #{tpu_custom_call.1} parent=1 // pred_check
      _
    $region15: #{tpu_custom_call.1} parent=1 // pred_check_branch
      %49 = sbr.rel (0) target = $region17
    $region16: #{tpu_custom_call.1} parent=1 // pred_region
      _
    $region17: #{tpu_custom_call.1} parent=1 // pred_fallthru
      _
    // Predicated region
    $region18: #{tpu_custom_call.1} parent=1 // pred_check
      _
    $region19: #{tpu_custom_call.1} parent=1 // pred_check_branch
      %51 = sbr.rel (0) target = $region21
    $region20: #{tpu_custom_call.1} parent=1 // pred_region
      %s53 = ssub.s32 512, 512
      %54 = vsyncadd [#allocation9], %s53
      %s55 = sshll.u32 [#allocation8], 4
      %s56 = int_to_ptr.vmem [resolvable:$true] %s55
      %61 = dma.hbm_to_vmem [thread:$0]  %s4, 512, %s56, [#allocation9], 128, 128, 8
    $region21: #{tpu_custom_call.1} parent=1 // pred_fallthru
      _
    // Predicated region
    $region22: #{tpu_custom_call.1} parent=1 // pred_check
      _
    $region23: #{tpu_custom_call.1} parent=1 // pred_check_branch
      %63 = sbr.rel (0) target = $region25
    $region24: #{tpu_custom_call.1} parent=1 // pred_region
      %s65 = ssub.s32 1024, 1024
      %66 = vsyncadd [#allocation9], %s65
      %s67 = sshll.u32 [#allocation10], 4
      %s68 = int_to_ptr.vmem [resolvable:$true] %s67
      %73 = dma.hbm_to_vmem [thread:$0]  %s5, 1024, %s68, [#allocation9], 128, 128, 8
    $region25: #{tpu_custom_call.1} parent=1 // pred_fallthru
      _
    // Predicated region
    $region26: #{tpu_custom_call.1} parent=1 // pred_check
      _
    $region27: #{tpu_custom_call.1} parent=1 // pred_check_branch
      %75 = sbr.rel (0) target = $region29
    $region28: #{tpu_custom_call.1} parent=1 // pred_region
      _
    $region29: #{tpu_custom_call.1} parent=1 // pred_fallthru
      _
    // Predicated region
    $region30: #{tpu_custom_call.1} parent=1 // pred_check
      _
    $region31: #{tpu_custom_call.1} parent=1 // pred_check_branch
      %77 = sbr.rel (0) target = $region33
    $region32: #{tpu_custom_call.1} parent=1 // pred_region
      %78 = dma.done [#allocation3], 128
    $region33: #{tpu_custom_call.1} parent=1 // pred_fallthru
      _
    // Predicated region
    $region34: #{tpu_custom_call.1} parent=1 // pred_check
      _
    $region35: #{tpu_custom_call.1} parent=1 // pred_check_branch
      %80 = sbr.rel (0) target = $region37
    $region36: #{tpu_custom_call.1} parent=1 // pred_region
      %81 = dma.done [#allocation6], 128
    $region37: #{tpu_custom_call.1} parent=1 // pred_fallthru
      _
    // Predicated region
    $region38: #{tpu_custom_call.1} parent=1 // pred_check
      _
    $region39: #{tpu_custom_call.1} parent=1 // pred_check_branch
      %83 = sbr.rel (0) target = $region41
    $region40: #{tpu_custom_call.1} parent=1 // pred_region
      %84 = dma.done [#allocation6], 384
    $region41: #{tpu_custom_call.1} parent=1 // pred_fallthru
      _
    // Predicated region
    $region42: #{tpu_custom_call.1} parent=1 // pred_check
      _
    $region43: #{tpu_custom_call.1} parent=1 // pred_check_branch
      %86 = sbr.rel (0) target = $region45
    $region44: #{tpu_custom_call.1} parent=1 // pred_region
      %87 = dma.done [#allocation9], 512
    $region45: #{tpu_custom_call.1} parent=1 // pred_fallthru
      _
    // Predicated region
    $region46: #{tpu_custom_call.1} parent=1 // pred_check
      _
    $region47: #{tpu_custom_call.1} parent=1 // pred_check_branch
      %89 = sbr.rel (0) target = $region49
    $region48: #{tpu_custom_call.1} parent=1 // pred_region
      %90 = dma.done [#allocation9], 1024
    $region49: #{tpu_custom_call.1} parent=1 // pred_fallthru
      _
    %v91 = vld [vmem:[%s6] sm:$0x1]
    %v92 = vld [vmem:[%s6 + $0x1] sm:$0x1]
    %v93 = vld [vmem:[%s6 + $0x2] sm:$0x1]
    %v94 = vld [vmem:[%s6 + $0x3] sm:$0x1]
    %v95 = vld [vmem:[%s6 + $0x4] sm:$0x1]
    %v96 = vld [vmem:[#allocation2] sm:$0xff]
    %v97 = vld [vmem:[#allocation7] sm:$0xff]
    %v98 = vld [vmem:[#allocation7 + $0x8] sm:$0xff]
    %v99 = vld [vmem:[#allocation7 + $0x10] sm:$0xff]
    %v100 = vld [vmem:[#allocation5] sm:$0xff]
    %v101 = vld [vmem:[%s3] sm:$0xff]
    %vm102 = vcmask 64512
    %v104 = vsel %vm102, %v100, 0
    %106 = vmatprep.subr.mxu0 0.0
    %107 = vmatpush1.msra.mxu0 %v101
    %108 = vmatprep.subr.mxu0 0.0
    %109 = vmatpush1.msra.mxu0 0.0
    %110 = vmatprep.subr.mxu0 0.0
    %111 = vmatpush1.msra.mxu0 0.0
    %112 = vmatprep.subr.mxu0 0.0
    %113 = vmatpush1.msra.mxu0 0.0
    %114 = vmatprep.subr.mxu0 0.0
    %115 = vmatpush1.msra.mxu0 0.0
    %116 = vmatprep.subr.mxu0 0.0
    %117 = vmatpush1.msra.mxu0 0.0
    %118 = vmatprep.subr.mxu0 0.0
    %119 = vmatpush1.msra.mxu0 0.0
    %120 = vmatprep.subr.mxu0 0.0
    %121 = vmatpush1.msra.mxu0 0.0
    %122 = vmatprep.subr.mxu0 0.0
    %123 = vmatpush1.msra.mxu0 0.0
    %124 = vmatprep.subr.mxu0 0.0
    %125 = vmatpush1.msra.mxu0 0.0
    %126 = vmatprep.subr.mxu0 0.0
    %127 = vmatpush1.msra.mxu0 0.0
    %128 = vmatprep.subr.mxu0 0.0
    %129 = vmatpush1.msra.mxu0 0.0
    %130 = vmatprep.subr.mxu0 0.0
    %131 = vmatpush1.msra.mxu0 0.0
    %132 = vmatprep.subr.mxu0 0.0
    %133 = vmatpush1.msra.mxu0 0.0
    %134 = vmatprep.subr.mxu0 0.0
    %135 = vmatpush1.msra.mxu0 0.0
    %136 = vmatprep.subr.mxu0 0.0
    %137 = vmatpush1.msra.mxu0 0.0
    %138 = vmatprep.subr.mxu0 0.0
    %139 = vmatpush1.msra.mxu0 0.0
    %140 = vmatprep.subr.mxu0 0.0
    %141 = vmatpush1.msra.mxu0 0.0
    %142 = vmatprep.subr.mxu0 0.0
    %143 = vmatpush1.msra.mxu0 0.0
    %144 = vmatprep.subr.mxu0 0.0
    %145 = vmatpush1.msra.mxu0 0.0
    %146 = vmatprep.subr.mxu0 0.0
    %147 = vmatpush1.msra.mxu0 0.0
    %148 = vmatprep.subr.mxu0 0.0
    %149 = vmatpush1.msra.mxu0 0.0
    %150 = vmatprep.subr.mxu0 0.0
    %151 = vmatpush1.msra.mxu0 0.0
    %152 = vmatprep.subr.mxu0 0.0
    %153 = vmatpush1.msra.mxu0 0.0
    %154 = vmatprep.subr.mxu0 0.0
    %155 = vmatpush1.msra.mxu0 0.0
    %156 = vmatprep.subr.mxu0 0.0
    %157 = vmatpush1.msra.mxu0 0.0
    %158 = vmatprep.subr.mxu0 0.0
    %159 = vmatpush1.msra.mxu0 0.0
    %160 = vmatprep.subr.mxu0 0.0
    %161 = vmatpush1.msra.mxu0 0.0
    %162 = vmatprep.subr.mxu0 0.0
    %163 = vmatpush1.msra.mxu0 0.0
    %164 = vmatprep.subr.mxu0 0.0
    %165 = vmatpush1.msra.mxu0 0.0
    %166 = vmatprep.subr.mxu0 0.0
    %167 = vmatpush1.msra.mxu0 0.0
    %168 = vmatprep.subr.mxu0 0.0
    %169 = vmatpush1.msra.mxu0 0.0
    %170 = vmatprep.mubr.f32.mxu0 0.0
    %171 = vmatmul.mubr.f32.gmra.mrb[0].mxu0 %v104
    %v172 = vpop.f32.mrb[0].mxu0
    %v173 = vadd.f32 0.0, %v172
    %v174 = vpop.f32.mrb[0].mxu0
    %175 = vdwg.mxu0
    %vm176 = vcmask 195584
    %v178 = vsel %vm176, %v96, 0
    %180 = vmatprep.subr.mxu0 0.0
    %181 = vmatpush1.msra.mxu0 %v97
    %182 = vmatprep.subr.mxu0 0.0
    %183 = vmatpush1.msra.mxu0 %v98
    %184 = vmatprep.subr.mxu0 0.0
    %185 = vmatpush1.msra.mxu0 %v99
    %186 = vmatprep.subr.mxu0 0.0
    %187 = vmatpush1.msra.mxu0 0.0
    %188 = vmatprep.subr.mxu0 0.0
    %189 = vmatpush1.msra.mxu0 0.0
    %190 = vmatprep.subr.mxu0 0.0
    %191 = vmatpush1.msra.mxu0 0.0
    %192 = vmatprep.subr.mxu0 0.0
    %193 = vmatpush1.msra.mxu0 0.0
    %194 = vmatprep.subr.mxu0 0.0
    %195 = vmatpush1.msra.mxu0 0.0
    %196 = vmatprep.subr.mxu0 0.0
    %197 = vmatpush1.msra.mxu0 0.0
    %198 = vmatprep.subr.mxu0 0.0
    %199 = vmatpush1.msra.mxu0 0.0
    %200 = vmatprep.subr.mxu0 0.0
    %201 = vmatpush1.msra.mxu0 0.0
    %202 = vmatprep.subr.mxu0 0.0
    %203 = vmatpush1.msra.mxu0 0.0
    %204 = vmatprep.subr.mxu0 0.0
    %205 = vmatpush1.msra.mxu0 0.0
    %206 = vmatprep.subr.mxu0 0.0
    %207 = vmatpush1.msra.mxu0 0.0
    %208 = vmatprep.subr.mxu0 0.0
    %209 = vmatpush1.msra.mxu0 0.0
    %210 = vmatprep.subr.mxu0 0.0
    %211 = vmatpush1.msra.mxu0 0.0
    %212 = vmatprep.subr.mxu0 0.0
    %213 = vmatpush1.msra.mxu0 0.0
    %214 = vmatprep.subr.mxu0 0.0
    %215 = vmatpush1.msra.mxu0 0.0
    %216 = vmatprep.subr.mxu0 0.0
    %217 = vmatpush1.msra.mxu0 0.0
    %218 = vmatprep.subr.mxu0 0.0
    %219 = vmatpush1.msra.mxu0 0.0
    %220 = vmatprep.subr.mxu0 0.0
    %221 = vmatpush1.msra.mxu0 0.0
    %222 = vmatprep.subr.mxu0 0.0
    %223 = vmatpush1.msra.mxu0 0.0
    %224 = vmatprep.subr.mxu0 0.0
    %225 = vmatpush1.msra.mxu0 0.0
    %226 = vmatprep.subr.mxu0 0.0
    %227 = vmatpush1.msra.mxu0 0.0
    %228 = vmatprep.subr.mxu0 0.0
    %229 = vmatpush1.msra.mxu0 0.0
    %230 = vmatprep.subr.mxu0 0.0
    %231 = vmatpush1.msra.mxu0 0.0
    %232 = vmatprep.subr.mxu0 0.0
    %233 = vmatpush1.msra.mxu0 0.0
    %234 = vmatprep.subr.mxu0 0.0
    %235 = vmatpush1.msra.mxu0 0.0
    %236 = vmatprep.subr.mxu0 0.0
    %237 = vmatpush1.msra.mxu0 0.0
    %238 = vmatprep.subr.mxu0 0.0
    %239 = vmatpush1.msra.mxu0 0.0
    %240 = vmatprep.subr.mxu0 0.0
    %241 = vmatpush1.msra.mxu0 0.0
    %242 = vmatprep.subr.mxu0 0.0
    %243 = vmatpush1.msra.mxu0 0.0
    %244 = vmatprep.mubr.f32.mxu0 0.0
    %245 = vmatmul.mubr.f32.gmra.mrb[0].mxu0 %v178
    %v246 = vpop.f32.mrb[0].mxu0
    %v247 = vadd.f32 %v173, %v246
    %v248 = vpop.f32.mrb[0].mxu0
    %249 = vdwg.mxu0
    %v250 = vlaneseq
    %v251 = vshrl.u32 %v250, 7
    %v252 = vsub.s32 0, %v251
    %v253 = vrot.slane %v91, %v252
    %v254 = vadd.f32 %v247, %v253
    %vm255 = vcmask 261120
    %v256 = vsel %vm255, %v254, 0.0
    %257 = vadd.xlane.f32.xlu0 %v256
    %v258 = vpop.xlane.xlu0 %257
    %v259 = vrcp.pop 32.0
    %v260 = vmul.f32 %v258, %v259
    %v261 = vsub.f32 %v254, %v260
    %v262 = vmul.f32 %v261, %v261
    %v263 = vsel %vm255, %v262, 0.0
    %264 = vadd.xlane.f32.xlu0 %v263
    %v265 = vpop.xlane.xlu0 %264
    %v266 = vmul.f32 %v265, %v259
    %v267 = vadd.f32 %v266, 1e-05
    %v268 = vrsqrt.pop %v267
    %v269 = vmul.f32 %v261, %v268
    %v270 = vlaneseq
    %v271 = vshrl.u32 %v270, 7
    %v272 = vsub.s32 0, %v271
    %v273 = vrot.slane %v92, %v272
    %v274 = vmul.f32 %v269, %v273
    %v275 = vlaneseq
    %v276 = vshrl.u32 %v275, 7
    %v277 = vsub.s32 0, %v276
    %v278 = vrot.slane %v93, %v277
    %v279 = vadd.f32 %v274, %v278
    %v280 = vtanh.pop %v279
    %v281 = vld [vmem:[#allocation8] sm:$0xff]
    %v282 = vld [vmem:[#allocation8 + $0x8] sm:$0xff]
    %v283 = vld [vmem:[#allocation8 + $0x10] sm:$0xff]
    %v284 = vld [vmem:[#allocation8 + $0x18] sm:$0xff]
    %v285 = vlaneseq
    %v286 = vshrl.u32 %v285, 7
    %v287 = vsub.s32 0, %v286
    %v288 = vrot.slane %v94, %v287
    %v290 = vsel %vm255, %v280, 0
    %292 = vmatprep.subr.mxu0 0.0
    %293 = vmatpush1.msra.mxu0 %v281
    %294 = vmatprep.subr.mxu0 0.0
    %295 = vmatpush1.msra.mxu0 %v282
    %296 = vmatprep.subr.mxu0 0.0
    %297 = vmatpush1.msra.mxu0 %v283
    %298 = vmatprep.subr.mxu0 0.0
    %299 = vmatpush1.msra.mxu0 %v284
    %300 = vmatprep.subr.mxu0 0.0
    %301 = vmatpush1.msra.mxu0 0.0
    %302 = vmatprep.subr.mxu0 0.0
    %303 = vmatpush1.msra.mxu0 0.0
    %304 = vmatprep.subr.mxu0 0.0
    %305 = vmatpush1.msra.mxu0 0.0
    %306 = vmatprep.subr.mxu0 0.0
    %307 = vmatpush1.msra.mxu0 0.0
    %308 = vmatprep.subr.mxu0 0.0
    %309 = vmatpush1.msra.mxu0 0.0
    %310 = vmatprep.subr.mxu0 0.0
    %311 = vmatpush1.msra.mxu0 0.0
    %312 = vmatprep.subr.mxu0 0.0
    %313 = vmatpush1.msra.mxu0 0.0
    %314 = vmatprep.subr.mxu0 0.0
    %315 = vmatpush1.msra.mxu0 0.0
    %316 = vmatprep.subr.mxu0 0.0
    %317 = vmatpush1.msra.mxu0 0.0
    %318 = vmatprep.subr.mxu0 0.0
    %319 = vmatpush1.msra.mxu0 0.0
    %320 = vmatprep.subr.mxu0 0.0
    %321 = vmatpush1.msra.mxu0 0.0
    %322 = vmatprep.subr.mxu0 0.0
    %323 = vmatpush1.msra.mxu0 0.0
    %324 = vmatprep.subr.mxu0 0.0
    %325 = vmatpush1.msra.mxu0 0.0
    %326 = vmatprep.subr.mxu0 0.0
    %327 = vmatpush1.msra.mxu0 0.0
    %328 = vmatprep.subr.mxu0 0.0
    %329 = vmatpush1.msra.mxu0 0.0
    %330 = vmatprep.subr.mxu0 0.0
    %331 = vmatpush1.msra.mxu0 0.0
    %332 = vmatprep.subr.mxu0 0.0
    %333 = vmatpush1.msra.mxu0 0.0
    %334 = vmatprep.subr.mxu0 0.0
    %335 = vmatpush1.msra.mxu0 0.0
    %336 = vmatprep.subr.mxu0 0.0
    %337 = vmatpush1.msra.mxu0 0.0
    %338 = vmatprep.subr.mxu0 0.0
    %339 = vmatpush1.msra.mxu0 0.0
    %340 = vmatprep.subr.mxu0 0.0
    %341 = vmatpush1.msra.mxu0 0.0
    %342 = vmatprep.subr.mxu0 0.0
    %343 = vmatpush1.msra.mxu0 0.0
    %344 = vmatprep.subr.mxu0 0.0
    %345 = vmatpush1.msra.mxu0 0.0
    %346 = vmatprep.subr.mxu0 0.0
    %347 = vmatpush1.msra.mxu0 0.0
    %348 = vmatprep.subr.mxu0 0.0
    %349 = vmatpush1.msra.mxu0 0.0
    %350 = vmatprep.subr.mxu0 0.0
    %351 = vmatpush1.msra.mxu0 0.0
    %352 = vmatprep.subr.mxu0 0.0
    %353 = vmatpush1.msra.mxu0 0.0
    %354 = vmatprep.subr.mxu0 0.0
    %355 = vmatpush1.msra.mxu0 0.0
    %356 = vmatprep.mubr.f32.mxu0 0.0
    %357 = vmatmul.mubr.f32.gmra.mrb[0].mxu0 %v290
    %v358 = vpop.f32.mrb[0].mxu0
    %v359 = vadd.f32 %v288, %v358
    %v360 = vpop.f32.mrb[0].mxu0
    %361 = vdwg.mxu0
    %v362 = vmax.f32 %v359, 0.0
    %v363 = vld [vmem:[#allocation10] sm:$0xff]
    %v364 = vld [vmem:[#allocation10 + $0x8] sm:$0xff]
    %v365 = vld [vmem:[#allocation10 + $0x10] sm:$0xff]
    %v366 = vld [vmem:[#allocation10 + $0x18] sm:$0xff]
    %v367 = vld [vmem:[#allocation10 + $0x20] sm:$0xff]
    %v368 = vld [vmem:[#allocation10 + $0x28] sm:$0xff]
    %v369 = vld [vmem:[#allocation10 + $0x30] sm:$0xff]
    %v370 = vld [vmem:[#allocation10 + $0x38] sm:$0xff]
    %v371 = vlaneseq
    %v372 = vshrl.u32 %v371, 7
    %v373 = vsub.s32 0, %v372
    %v374 = vrot.slane %v95, %v373
    %vm375 = vcmask 523264
    %v377 = vsel %vm375, %v362, 0
    %379 = vmatprep.subr.mxu0 0.0
    %380 = vmatpush1.msra.mxu0 %v363
    %381 = vmatprep.subr.mxu0 0.0
    %382 = vmatpush1.msra.mxu0 %v364
    %383 = vmatprep.subr.mxu0 0.0
    %384 = vmatpush1.msra.mxu0 %v365
    %385 = vmatprep.subr.mxu0 0.0
    %386 = vmatpush1.msra.mxu0 %v366
    %387 = vmatprep.subr.mxu0 0.0
    %388 = vmatpush1.msra.mxu0 %v367
    %389 = vmatprep.subr.mxu0 0.0
    %390 = vmatpush1.msra.mxu0 %v368
    %391 = vmatprep.subr.mxu0 0.0
    %392 = vmatpush1.msra.mxu0 %v369
    %393 = vmatprep.subr.mxu0 0.0
    %394 = vmatpush1.msra.mxu0 %v370
    %395 = vmatprep.subr.mxu0 0.0
    %396 = vmatpush1.msra.mxu0 0.0
    %397 = vmatprep.subr.mxu0 0.0
    %398 = vmatpush1.msra.mxu0 0.0
    %399 = vmatprep.subr.mxu0 0.0
    %400 = vmatpush1.msra.mxu0 0.0
    %401 = vmatprep.subr.mxu0 0.0
    %402 = vmatpush1.msra.mxu0 0.0
    %403 = vmatprep.subr.mxu0 0.0
    %404 = vmatpush1.msra.mxu0 0.0
    %405 = vmatprep.subr.mxu0 0.0
    %406 = vmatpush1.msra.mxu0 0.0
    %407 = vmatprep.subr.mxu0 0.0
    %408 = vmatpush1.msra.mxu0 0.0
    %409 = vmatprep.subr.mxu0 0.0
    %410 = vmatpush1.msra.mxu0 0.0
    %411 = vmatprep.subr.mxu0 0.0
    %412 = vmatpush1.msra.mxu0 0.0
    %413 = vmatprep.subr.mxu0 0.0
    %414 = vmatpush1.msra.mxu0 0.0
    %415 = vmatprep.subr.mxu0 0.0
    %416 = vmatpush1.msra.mxu0 0.0
    %417 = vmatprep.subr.mxu0 0.0
    %418 = vmatpush1.msra.mxu0 0.0
    %419 = vmatprep.subr.mxu0 0.0
    %420 = vmatpush1.msra.mxu0 0.0
    %421 = vmatprep.subr.mxu0 0.0
    %422 = vmatpush1.msra.mxu0 0.0
    %423 = vmatprep.subr.mxu0 0.0
    %424 = vmatpush1.msra.mxu0 0.0
    %425 = vmatprep.subr.mxu0 0.0
    %426 = vmatpush1.msra.mxu0 0.0
    %427 = vmatprep.subr.mxu0 0.0
    %428 = vmatpush1.msra.mxu0 0.0
    %429 = vmatprep.subr.mxu0 0.0
    %430 = vmatpush1.msra.mxu0 0.0
    %431 = vmatprep.subr.mxu0 0.0
    %432 = vmatpush1.msra.mxu0 0.0
    %433 = vmatprep.subr.mxu0 0.0
    %434 = vmatpush1.msra.mxu0 0.0
    %435 = vmatprep.subr.mxu0 0.0
    %436 = vmatpush1.msra.mxu0 0.0
    %437 = vmatprep.subr.mxu0 0.0
    %438 = vmatpush1.msra.mxu0 0.0
    %439 = vmatprep.subr.mxu0 0.0
    %440 = vmatpush1.msra.mxu0 0.0
    %441 = vmatprep.subr.mxu0 0.0
    %442 = vmatpush1.msra.mxu0 0.0
    %443 = vmatprep.mubr.f32.mxu0 0.0
    %444 = vmatmul.mubr.f32.gmra.mrb[0].mxu0 %v377
    %v445 = vpop.f32.mrb[0].mxu0
    %v446 = vadd.f32 %v374, %v445
    %v447 = vpop.f32.mrb[0].mxu0
    %448 = vdwg.mxu0
    %449 = vst [vmem:[#allocation11] sm:$0xff] %v446
    // Predicated region
    $region50: #{tpu_custom_call.1} parent=1 // pred_check
      _
    $region51: #{tpu_custom_call.1} parent=1 // pred_check_branch
      %451 = sbr.rel (0) target = $region53
    $region52: #{tpu_custom_call.1} parent=1 // pred_region
      %s453 = ssub.s32 128, 128
      %454 = vsyncadd [#allocation4], %s453
      %s456 = sshll.u32 [#allocation11], 4
      %s457 = int_to_ptr.vmem [resolvable:$true] %s456
      %459 = dma.vmem_to_hbm [thread:$0]  %s457, 128, %s7, [#allocation4]
    $region53: #{tpu_custom_call.1} parent=1 // pred_fallthru
      _
    // Predicated region
    $region54: #{tpu_custom_call.1} parent=1 // pred_check
      _
    $region55: #{tpu_custom_call.1} parent=1 // pred_check_branch
      %461 = sbr.rel (0) target = $region57
    $region56: #{tpu_custom_call.1} parent=1 // pred_region
      %462 = dma.done [#allocation4], 128
    $region57: #{tpu_custom_call.1} parent=1 // pred_fallthru
      _
    %463 = vsyncpa [#allocation3], 1
    %464 = vsyncpa [#allocation6], 1
    %465 = vsyncpa [#allocation9], 1
    %466 = vsyncpa [#allocation4], 1

</llo_original>
